<compile_context>
chip_gen: v5e
topology: v5e:2x2
jax: 0.10.0
libtpu: 0.0.40
codegen_flags: <defaults>
</compile_context>

<pallas_src>
import jax
import jax.numpy as jnp
from jax import lax
from jax.experimental import pallas as pl
from jax.experimental.pallas import tpu as pltpu


def _round_up(x, m):
    return (x + m - 1) // m * m


def _blk_bytes(rows, cols, itemsize):
    """VMEM footprint of one (rows, cols) block, sublane/lane padding included."""
    r_al = max(8, 32 // itemsize)  # 8 rows/vreg f32, 16 bf16, 32 int8
    return _round_up(max(rows, 1), r_al) * _round_up(max(cols, 1), 128) * itemsize


def _physical_vmem_bytes():
    """Best-effort per-generation physical VMEM size (bytes)."""
    try:
        info = pltpu.get_tpu_info()
        v = int(getattr(info, "vmem_capacity_bytes", 0) or 0)
        if v > 0:
            return v
    except Exception:
        pass
    return 64 * 1024 * 1024  # conservative default (v7x)


def _linear_probe_kernel(xi_ref, xj_ref, wi_ref, wj_ref, b_ref, o_ref):
    # out = x_i @ W_i.T + x_j @ W_j.T + b
    # Weights arrive as [2k, Dk]; contract the last axes of both operands (A @ B.T).
    dims = (((1,), (1,)), ((), ()))
    acc = lax.dot_general(xi_ref[...], wi_ref[...], dims,
                          preferred_element_type=jnp.float32)
    acc = acc + lax.dot_general(xj_ref[...], wj_ref[...], dims,
                                preferred_element_type=jnp.float32)
    # Bias added in f32 before the downcast; VPU has huge slack in this mem-bound kernel.
    o_ref[...] = (acc + b_ref[...]).astype(o_ref.dtype)


def linear_probe(x_i, x_j, weight, bias):
    """x_i, x_j: [B, D]; weight: [2, 2*D]; bias: [2]  ->  [B, 2]."""
    B, D = x_i.shape
    assert x_j.shape == (B, D)
    assert weight.shape == (2, 2 * D) and bias.shape == (2,)

    out_dtype = x_i.dtype
    itemsize = jnp.dtype(x_i.dtype).itemsize
    w_isz = jnp.dtype(weight.dtype).itemsize

    # ---- Small-D lane packing: pack k batch rows into one 128-lane-filling row. ----
    k = max(1, 128 // D) if D <= 64 else 1
    Dk = k * D          # packed feature width per input
    out_n = 2 * k       # packed output width

    w_i = weight[:, :D]  # [2, D]
    w_j = weight[:, D:]  # [2, D]
    if k > 1:
        eye_k = jnp.eye(k, dtype=weight.dtype)
        w_i = jnp.kron(eye_k, w_i)   # [2k, k*D] block-diagonal
        w_j = jnp.kron(eye_k, w_j)
        b_p = jnp.tile(bias, k)      # [2k]
    else:
        b_p = bias
    b_p = b_p.astype(jnp.float32).reshape(1, out_n)

    # Pad batch to a multiple of k, then fold k rows into each packed row (row-major).
    B_k = _round_up(B, k)
    if B_k != B:
        pad = ((0, B_k - B), (0, 0))
        x_i = jnp.pad(x_i, pad)
        x_j = jnp.pad(x_j, pad)
    Bk = B_k // k
    if k > 1:
        x_i = x_i.reshape(Bk, Dk)    # contiguous, metadata-only
        x_j = x_j.reshape(Bk, Dk)

    # ---- Tile sizing: per-step HBM-byte target with lane-padding-aware VMEM cap. ----
    row_align = 8 if itemsize >= 4 else (16 if itemsize == 2 else 32)
    Dk_pad = _round_up(Dk, 128)
    outn_pad = _round_up(out_n, 128)

    vmem_phys = _physical_vmem_bytes()
    # Usable scoped-VMEM ceiling with explicit headroom:
    #   v7x (64 MiB phys)  -> ~52 MiB;  v5e/v6e (128 MiB phys) -> ~105 MiB.
    vmem_cap = min(vmem_phys - 12 * 1024 * 1024, int(vmem_phys * 0.82))

    # Grid-invariant resident blocks (weights + bias), double-buffered by the pipeline.
    resident = 2 * 2 * _blk_bytes(out_n, Dk, w_isz) + 2 * _blk_bytes(1, out_n, 4)
    # Per-batch-row VMEM: 2 inputs x 2 buffers + output x 2 buffers (lane-padded).
    per_row = itemsize * (4 * Dk_pad + 2 * outn_pad)
    tile_cap_vmem = max(row_align,
                        (vmem_cap - resident - 8 * 1024 * 1024) // per_row)

    # Per-step HBM input bytes: target ~4 MiB, floor ~1 MiB (per-step overhead ~0.35 us).
    step_in_bytes = 2 * Dk * itemsize
    tile_hi = max(row_align, (4 * 1024 * 1024) // step_in_bytes)
    tile_lo = max(row_align, (1 * 1024 * 1024) // step_in_bytes)
    grid_guard = max(row_align, -(-Bk // 8))  # keep >= ~8 steps for 2-TC sharding (v7x)

    Bk_al = _round_up(Bk, row_align)
    tile_b = min(tile_hi, tile_cap_vmem)
    tile_b = min(tile_b, max(grid_guard, tile_lo))
    tile_b = min(tile_b, Bk_al)
    tile_b = max(row_align, (tile_b // row_align) * row_align)

    Bk_pad = _round_up(Bk, tile_b)
    if Bk_pad != Bk:
        pad = ((0, Bk_pad - Bk), (0, 0))
        x_i = jnp.pad(x_i, pad)
        x_j = jnp.pad(x_j, pad)

    grid = (Bk_pad // tile_b,)

    # Scoped-VMEM limit: always covers the computed block footprint, never above the
    # per-generation ceiling (tile_cap_vmem guarantees footprint + headroom <= ceiling).
    vmem_needed = (2 * 2 * _blk_bytes(tile_b, Dk, itemsize)
                   + 2 * _blk_bytes(tile_b, out_n, itemsize)
                   + resident)
    vmem_limit = int(min(vmem_cap,
                         max(vmem_needed + 4 * 1024 * 1024, 16 * 1024 * 1024)))

    out = pl.pallas_call(
        _linear_probe_kernel,
        out_shape=jax.ShapeDtypeStruct((Bk_pad, out_n), out_dtype),
        grid_spec=pl.GridSpec(
            grid=grid,
            in_specs=[
                pl.BlockSpec((tile_b, Dk), lambda i: (i, 0)),
                pl.BlockSpec((tile_b, Dk), lambda i: (i, 0)),
                pl.BlockSpec((out_n, Dk), lambda i: (0, 0)),   # VMEM-resident weights
                pl.BlockSpec((out_n, Dk), lambda i: (0, 0)),
                pl.BlockSpec((1, out_n), lambda i: (0, 0)),    # VMEM-resident bias (f32)
            ],
            out_specs=pl.BlockSpec((tile_b, out_n), lambda i: (i, 0)),
        ),
        compiler_params=pltpu.CompilerParams(
            # TODO(synk): on v7x, confirm in the profile that both TensorCores are busy;
            # if not, switch the batch axis to pltpu.CORE_PARALLEL.
            dimension_semantics=("parallel",),
            vmem_limit_bytes=vmem_limit,
        ),
    )(x_i, x_j, w_i, w_j, b_p)

    out = out[:Bk]
    if k > 1:
        out = out.reshape(B_k, 2)   # unpack: row r, cols 2j:2j+2 -> batch row r*k + j
    return out[:B]


if __name__ == "__main__":
    key = jax.random.PRNGKey(0)
    B, D = 8, 32  # small shapes; linear layer is 2*D -> 2

    k_xi, k_xj, k_w, k_b = jax.random.split(key, 4)
    x_i = jax.random.normal(k_xi, (B, D), dtype=jnp.float32)
    x_j = jax.random.normal(k_xj, (B, D), dtype=jnp.float32)

    # Deterministic init mimicking nn.Linear default: U(-1/sqrt(fan_in), 1/sqrt(fan_in))
    fan_in = 2 * D
    bound = 1.0 / (fan_in ** 0.5)
    weight = jax.random.uniform(k_w, (2, fan_in), minval=-bound, maxval=bound,
                                dtype=jnp.float32)
    bias = jax.random.uniform(k_b, (2,), minval=-bound, maxval=bound,
                              dtype=jnp.float32)

    out = linear_probe(x_i, x_j, weight, bias)
    jax.block_until_ready(out)

    # Reference check in plain JAX (same math as torch.cat + nn.Linear)
    z = jnp.concatenate([x_i, x_j], axis=-1)
    ref = z @ weight.T + bias
    assert out.shape == (B, 2)
    assert jnp.allclose(out, ref, atol=1e-5, rtol=1e-5)

    # Also exercise the unpacked (k == 1) path with a D that is not a multiple of 128.
    D2 = 160
    x_i2 = jax.random.normal(k_xi, (B, D2), dtype=jnp.float32)
    x_j2 = jax.random.normal(k_xj, (B, D2), dtype=jnp.float32)
    bound2 = 1.0 / ((2 * D2) ** 0.5)
    w2 = jax.random.uniform(k_w, (2, 2 * D2), minval=-bound2, maxval=bound2,
                            dtype=jnp.float32)
    b2 = jax.random.uniform(k_b, (2,), minval=-bound2, maxval=bound2,
                            dtype=jnp.float32)
    out2 = linear_probe(x_i2, x_j2, w2, b2)
    jax.block_until_ready(out2)
    ref2 = jnp.concatenate([x_i2, x_j2], axis=-1) @ w2.T + b2
    assert out2.shape == (B, 2)
    assert jnp.allclose(out2, ref2, atol=1e-4, rtol=1e-4)

    print("KERNEL_OK")
</pallas_src>

<mosaic_0001>
module attributes {stable_mosaic.version = 11 : i64} {
  func.func @_linear_probe_kernel(%arg0: i32, %arg1: memref<8x128xf32, #tpu.memory_space<vmem>>, %arg2: memref<8x128xf32, #tpu.memory_space<vmem>>, %arg3: memref<8x128xf32, #tpu.memory_space<vmem>>, %arg4: memref<8x128xf32, #tpu.memory_space<vmem>>, %arg5: memref<1x8xf32, #tpu.memory_space<vmem>>, %arg6: memref<8x8xf32, #tpu.memory_space<vmem>>) attributes {dimension_semantics = [#tpu.dimension_semantics<parallel>], iteration_bounds = array<i64: 1>, scalar_prefetch = 0 : i64, scratch_operands = 0 : i64, tpu.core_type = #tpu.core_type<tc>, window_params = [{transform_indices = @transform_0, window_bounds = array<i64: 8, 128>}, {transform_indices = @transform_1, window_bounds = array<i64: 8, 128>}, {pipeline_mode = #tpu.pipeline_mode<synchronous>, transform_indices = @transform_2, window_bounds = array<i64: 8, 128>}, {pipeline_mode = #tpu.pipeline_mode<synchronous>, transform_indices = @transform_3, window_bounds = array<i64: 8, 128>}, {pipeline_mode = #tpu.pipeline_mode<synchronous>, transform_indices = @transform_4, window_bounds = array<i64: 1, 8>}, {transform_indices = @transform_5, window_bounds = array<i64: 8, 8>}]} {
    %c0 = arith.constant 0 : index
    %c0_0 = arith.constant 0 : index
    %0 = vector.load %arg1[%c0, %c0_0] : memref<8x128xf32, #tpu.memory_space<vmem>>, vector<8x128xf32>
    %c0_1 = arith.constant 0 : index
    %c0_2 = arith.constant 0 : index
    %1 = vector.load %arg3[%c0_1, %c0_2] : memref<8x128xf32, #tpu.memory_space<vmem>>, vector<8x128xf32>
    %cst = arith.constant dense<0.000000e+00> : vector<8x8xf32>
    %2 = tpu.matmul %0, %1, %cst {dimension_numbers = #tpu.dot_dimension_numbers<[1], [1], [0], [0], [0, 0, 1, 0], [], []>} : vector<8x128xf32>, vector<8x128xf32>, vector<8x8xf32> -> vector<8x8xf32>
    %c0_3 = arith.constant 0 : index
    %c0_4 = arith.constant 0 : index
    %3 = vector.load %arg2[%c0_3, %c0_4] : memref<8x128xf32, #tpu.memory_space<vmem>>, vector<8x128xf32>
    %c0_5 = arith.constant 0 : index
    %c0_6 = arith.constant 0 : index
    %4 = vector.load %arg4[%c0_5, %c0_6] : memref<8x128xf32, #tpu.memory_space<vmem>>, vector<8x128xf32>
    %cst_7 = arith.constant dense<0.000000e+00> : vector<8x8xf32>
    %5 = tpu.matmul %3, %4, %cst_7 {dimension_numbers = #tpu.dot_dimension_numbers<[1], [1], [0], [0], [0, 0, 1, 0], [], []>} : vector<8x128xf32>, vector<8x128xf32>, vector<8x8xf32> -> vector<8x8xf32>
    %6 = arith.addf %2, %5 : vector<8x8xf32>
    %c0_8 = arith.constant 0 : index
    %c0_9 = arith.constant 0 : index
    %7 = vector.load %arg5[%c0_8, %c0_9] : memref<1x8xf32, #tpu.memory_space<vmem>>, vector<1x8xf32>
    %8 = vector.broadcast %7 : vector<1x8xf32> to vector<8x8xf32>
    %9 = arith.addf %6, %8 : vector<8x8xf32>
    %c0_10 = arith.constant 0 : index
    %c0_11 = arith.constant 0 : index
    %10 = vector.load %arg6[%c0_10, %c0_11] : memref<8x8xf32, #tpu.memory_space<vmem>>, vector<8x8xf32>
    tpu.vector_store %arg6[%c0_10, %c0_11], %9 {strides = array<i32>} : memref<8x8xf32, #tpu.memory_space<vmem>>, vector<8x8xf32>,
    return
  }
  func.func @transform_0(%arg0: i32) -> (i32, i32) {
    %c0_i32 = arith.constant 0 : i32
    %c0_i32_0 = arith.constant 0 : i32
    return %arg0, %c0_i32 : i32, i32
  }
  func.func @transform_1(%arg0: i32) -> (i32, i32) {
    %c0_i32 = arith.constant 0 : i32
    %c0_i32_0 = arith.constant 0 : i32
    return %arg0, %c0_i32 : i32, i32
  }
  func.func @transform_2(%arg0: i32) -> (i32, i32) {
    %c0_i32 = arith.constant 0 : i32
    %c0_i32_0 = arith.constant 0 : i32
    %c0_i32_1 = arith.constant 0 : i32
    return %c0_i32, %c0_i32_0 : i32, i32
  }
  func.func @transform_3(%arg0: i32) -> (i32, i32) {
    %c0_i32 = arith.constant 0 : i32
    %c0_i32_0 = arith.constant 0 : i32
    %c0_i32_1 = arith.constant 0 : i32
    return %c0_i32, %c0_i32_0 : i32, i32
  }
  func.func @transform_4(%arg0: i32) -> (i32, i32) {
    %c0_i32 = arith.constant 0 : i32
    %c0_i32_0 = arith.constant 0 : i32
    %c0_i32_1 = arith.constant 0 : i32
    return %c0_i32, %c0_i32_0 : i32, i32
  }
  func.func @transform_5(%arg0: i32) -> (i32, i32) {
    %c0_i32 = arith.constant 0 : i32
    %c0_i32_0 = arith.constant 0 : i32
    return %arg0, %c0_i32 : i32, i32
  }
}

</mosaic_0001>

<llo_original>
// kernel: tpu_custom_call.1
$region0: #{tpu_custom_call.1}
  #allocation0 [shape = 'u32[]', space=smem, size = 0x4, offset = 0x4, fixed_abs, tag = 'smem constant byte address 0x4 - core index']
  #allocation1 [shape = 'u32[72,128]{1,0:T(1,128)}', space=vmem, size = 0x9000, scoped, tag = 'internal scratch']
  %s0 = inlined_call_operand.hbm [shape: f32[8,128], index: 0, kind: input, shape index: {}]
  %s1 = inlined_call_operand.hbm [shape: f32[8,128], index: 1, kind: input, shape index: {}]
  %s2 = inlined_call_operand.hbm [shape: f32[8,128], index: 2, kind: input, shape index: {}]
  %s3 = inlined_call_operand.hbm [shape: f32[8,128], index: 3, kind: input, shape index: {}]
  %s4 = inlined_call_operand.vmem [shape: f32[1,8], index: 4, kind: input, shape index: {}]
  %s5 = inlined_call_operand.hbm [shape: f32[8,8], index: 5, kind: output, shape index: {}]
  %s6 = sld [smem:[#allocation0]]
  $region46: #{tpu_custom_call.1} parent=0
    _
  %s8 = ssub.s32 1, %s6
  %s9 = scalar_select 0, %s8, %s6
  $region1: #{tpu_custom_call.1} parent=0
    #allocation2 [shape = 'u8[4096]{0}', space=vmem, size = 0x1000, scoped, tag = 'input window, operand 0, single buffered']
    #allocation3 [shape = 's32[1]{0}', space=sflag, size = 0x4, scoped, tag = 'scoped memory for tpu_custom_call.1']
    #allocation4 [shape = 's32[1]{0}', space=sflag, size = 0x4, scoped, tag = 'scoped memory for tpu_custom_call.1']
    #allocation5 [shape = 'u8[4096]{0}', space=vmem, size = 0x1000, scoped, tag = 'input window, operand 1, single buffered']
    #allocation6 [shape = 's32[1]{0}', space=sflag, size = 0x4, scoped, tag = 'scoped memory for tpu_custom_call.1']
    #allocation7 [shape = 'u8[4096]{0}', space=vmem, size = 0x1000, scoped, tag = 'input window, operand 2, single buffered']
    #allocation8 [shape = 'u8[4096]{0}', space=vmem, size = 0x1000, scoped, tag = 'input window, operand 3, single buffered']
    #allocation9 [shape = 's32[1]{0}', space=sflag, size = 0x4, scoped, tag = 'scoped memory for tpu_custom_call.1']
    #allocation10 [shape = 'u8[4096]{0}', space=vmem, size = 0x1000, scoped, tag = 'output window, operand 0, single buffered']
    %10 = vsyncpa [#allocation3], 0
    %11 = vsyncpa [#allocation6], 0
    %12 = vsyncpa [#allocation9], 0
    %13 = vsyncpa [#allocation4], 0
    // Predicated region
    $region2: #{tpu_custom_call.1} parent=1 // pred_check
      _
    $region3: #{tpu_custom_call.1} parent=1 // pred_check_branch
      %15 = sbr.rel (0) target = $region5
    $region4: #{tpu_custom_call.1} parent=1 // pred_region
      %17 = vsyncadd [#allocation3], 0
      %s19 = sshll.u32 %s0, 4
      %s20 = int_to_ptr.hbm [resolvable:$true] %s19
      %s21 = sshll.u32 [#allocation2], 4
      %s22 = int_to_ptr.vmem [resolvable:$true] %s21
      %24 = dma.hbm_to_vmem [thread:$0]  %s20, 128, %s22, [#allocation3]
    $region5: #{tpu_custom_call.1} parent=1 // pred_fallthru
      _
    // Predicated region
    $region6: #{tpu_custom_call.1} parent=1 // pred_check
      _
    $region7: #{tpu_custom_call.1} parent=1 // pred_check_branch
      %26 = sbr.rel (0) target = $region9
    $region8: #{tpu_custom_call.1} parent=1 // pred_region
      %28 = vsyncadd [#allocation6], 0
      %s30 = sshll.u32 %s1, 4
      %s31 = int_to_ptr.hbm [resolvable:$true] %s30
      %s32 = sshll.u32 [#allocation5], 4
      %s33 = int_to_ptr.vmem [resolvable:$true] %s32
      %35 = dma.hbm_to_vmem [thread:$0]  %s31, 128, %s33, [#allocation6]
    $region9: #{tpu_custom_call.1} parent=1 // pred_fallthru
      _
    // Predicated region
    $region10: #{tpu_custom_call.1} parent=1 // pred_check
      _
    $region11: #{tpu_custom_call.1} parent=1 // pred_check_branch
      %37 = sbr.rel (0) target = $region13
    $region12: #{tpu_custom_call.1} parent=1 // pred_region
      %39 = vsyncadd [#allocation6], 0
      %s41 = sshll.u32 %s2, 4
      %s42 = int_to_ptr.hbm [resolvable:$true] %s41
      %s43 = sshll.u32 [#allocation7], 4
      %s44 = int_to_ptr.vmem [resolvable:$true] %s43
      %46 = dma.hbm_to_vmem [thread:$0]  %s42, 128, %s44, [#allocation6]
    $region13: #{tpu_custom_call.1} parent=1 // pred_fallthru
      _
    // Predicated region
    $region14: #{tpu_custom_call.1} parent=1 // pred_check
      _
    $region15: #{tpu_custom_call.1} parent=1 // pred_check_branch
      %48 = sbr.rel (0) target = $region17
    $region16: #{tpu_custom_call.1} parent=1 // pred_region
      %50 = vsyncadd [#allocation9], 0
      %s52 = sshll.u32 %s3, 4
      %s53 = int_to_ptr.hbm [resolvable:$true] %s52
      %s54 = sshll.u32 [#allocation8], 4
      %s55 = int_to_ptr.vmem [resolvable:$true] %s54
      %57 = dma.hbm_to_vmem [thread:$0]  %s53, 128, %s55, [#allocation9]
    $region17: #{tpu_custom_call.1} parent=1 // pred_fallthru
      _
    // Predicated region
    $region18: #{tpu_custom_call.1} parent=1 // pred_check
      _
    $region19: #{tpu_custom_call.1} parent=1 // pred_check_branch
      %59 = sbr.rel (0) target = $region21
    $region20: #{tpu_custom_call.1} parent=1 // pred_region
      _
    $region21: #{tpu_custom_call.1} parent=1 // pred_fallthru
      _
    // Predicated region
    $region22: #{tpu_custom_call.1} parent=1 // pred_check
      _
    $region23: #{tpu_custom_call.1} parent=1 // pred_check_branch
      %61 = sbr.rel (0) target = $region25
    $region24: #{tpu_custom_call.1} parent=1 // pred_region
      %63 = dma.done [#allocation3], 128
    $region25: #{tpu_custom_call.1} parent=1 // pred_fallthru
      _
    // Predicated region
    $region26: #{tpu_custom_call.1} parent=1 // pred_check
      _
    $region27: #{tpu_custom_call.1} parent=1 // pred_check_branch
      %65 = sbr.rel (0) target = $region29
    $region28: #{tpu_custom_call.1} parent=1 // pred_region
      %67 = dma.done [#allocation6], 128
    $region29: #{tpu_custom_call.1} parent=1 // pred_fallthru
      _
    // Predicated region
    $region30: #{tpu_custom_call.1} parent=1 // pred_check
      _
    $region31: #{tpu_custom_call.1} parent=1 // pred_check_branch
      %69 = sbr.rel (0) target = $region33
    $region32: #{tpu_custom_call.1} parent=1 // pred_region
      %71 = dma.done [#allocation6], 128
    $region33: #{tpu_custom_call.1} parent=1 // pred_fallthru
      _
    // Predicated region
    $region34: #{tpu_custom_call.1} parent=1 // pred_check
      _
    $region35: #{tpu_custom_call.1} parent=1 // pred_check_branch
      %73 = sbr.rel (0) target = $region37
    $region36: #{tpu_custom_call.1} parent=1 // pred_region
      %75 = dma.done [#allocation9], 128
    $region37: #{tpu_custom_call.1} parent=1 // pred_fallthru
      _
    %v76 = vld [vmem:[#allocation2] sm:$0xff]
    %v77 = vld [vmem:[#allocation7] sm:$0xff]
    %v78 = vld [vmem:[#allocation5] sm:$0xff]
    %v79 = vld [vmem:[#allocation8] sm:$0xff]
    %80 = vmatpush.xpose.msra.mxu0 0.0
    %81 = vmatpush.xpose.msra.mxu0 0.0
    %82 = vmatpush.xpose.msra.mxu0 0.0
    %83 = vmatpush.xpose.msra.mxu0 0.0
    %84 = vmatpush.xpose.msra.mxu0 0.0
    %85 = vmatpush.xpose.msra.mxu0 0.0
    %86 = vmatpush.xpose.msra.mxu0 0.0
    %87 = vmatpush.xpose.msra.mxu0 0.0
    %88 = vmatpush.xpose.msra.mxu0 0.0
    %89 = vmatpush.xpose.msra.mxu0 0.0
    %90 = vmatpush.xpose.msra.mxu0 0.0
    %91 = vmatpush.xpose.msra.mxu0 0.0
    %92 = vmatpush.xpose.msra.mxu0 0.0
    %93 = vmatpush.xpose.msra.mxu0 0.0
    %94 = vmatpush.xpose.msra.mxu0 0.0
    %95 = vmatpush.xpose.msra.mxu0 %v79
    %96 = vmatmul.f32.gmra.mxu0 %v78
    %v97 = vpop.f32.mrf.mxu0
    %v98 = vadd.f32 0.0, %v97
    %99 = vdwg.mxu0
    %100 = vmatpush.xpose.msra.mxu0 0.0
    %101 = vmatpush.xpose.msra.mxu0 0.0
    %102 = vmatpush.xpose.msra.mxu0 0.0
    %103 = vmatpush.xpose.msra.mxu0 0.0
    %104 = vmatpush.xpose.msra.mxu0 0.0
    %105 = vmatpush.xpose.msra.mxu0 0.0
    %106 = vmatpush.xpose.msra.mxu0 0.0
    %107 = vmatpush.xpose.msra.mxu0 0.0
    %108 = vmatpush.xpose.msra.mxu0 0.0
    %109 = vmatpush.xpose.msra.mxu0 0.0
    %110 = vmatpush.xpose.msra.mxu0 0.0
    %111 = vmatpush.xpose.msra.mxu0 0.0
    %112 = vmatpush.xpose.msra.mxu0 0.0
    %113 = vmatpush.xpose.msra.mxu0 0.0
    %114 = vmatpush.xpose.msra.mxu0 0.0
    %115 = vmatpush.xpose.msra.mxu0 %v77
    %116 = vmatmul.f32.gmra.mxu0 %v76
    %v117 = vpop.f32.mrf.mxu0
    %v118 = vadd.f32 %v98, %v117
    %119 = vdwg.mxu0
    %v120 = vld [vmem:[%s4] sm:$0x1]
    %v122 = vperm.slane %v120, 0
    %v124 = vadd.f32 %v118, %v122
    %vm125 = vcmask 64512
    %126 = vst.msk [vmem:[#allocation10] sm:$0xff] %vm125, %v124
    // Predicated region
    $region38: #{tpu_custom_call.1} parent=1 // pred_check
      _
    $region39: #{tpu_custom_call.1} parent=1 // pred_check_branch
      %128 = sbr.rel (0) target = $region41
    $region40: #{tpu_custom_call.1} parent=1 // pred_region
      %130 = vsyncadd [#allocation4], 0
      %s132 = sshll.u32 [#allocation10], 4
      %s133 = int_to_ptr.vmem [resolvable:$true] %s132
      %s134 = sshll.u32 %s5, 4
      %s135 = int_to_ptr.hbm [resolvable:$true] %s134
      %137 = dma.vmem_to_hbm [thread:$0]  %s133, 128, %s135, [#allocation4]
    $region41: #{tpu_custom_call.1} parent=1 // pred_fallthru
      _
    // Predicated region
    $region42: #{tpu_custom_call.1} parent=1 // pred_check
      _
    $region43: #{tpu_custom_call.1} parent=1 // pred_check_branch
      %139 = sbr.rel (0) target = $region45
    $region44: #{tpu_custom_call.1} parent=1 // pred_region
      %141 = dma.done [#allocation4], 128
    $region45: #{tpu_custom_call.1} parent=1 // pred_fallthru
      _
    %142 = vsyncpa [#allocation3], 1
    %143 = vsyncpa [#allocation6], 1
    %144 = vsyncpa [#allocation9], 1
    %145 = vsyncpa [#allocation4], 1

</llo_original>
